<compile_context>
chip_gen: v7x
topology: tpu7x:2x2x1
jax: 0.10.0
libtpu: 0.0.40
codegen_flags: <defaults>
</compile_context>

<pallas_src>
import functools

import jax
import jax.numpy as jnp
from jax.experimental import pallas as pl
from jax.experimental.pallas import tpu as pltpu


def _round_up(x, m):
    return (x + m - 1) // m * m


# ---------------------------------------------------------------------------
# Fused CfC cell kernel
#   xh_ref : (tb, D)          concat(input, hx)
#   ts_ref : (tb, 1)          per-sample time step
#   wbb/bbb: (D, U) / (1, U)  backbone Linear
#   wh/bh  : (U, 4*Hp)/(1,4*Hp)  packed heads [ff1 | ff2 | time_a | time_b]
#   out    : (tb, Hp)         new hidden state (padded to 128 lanes)
# ---------------------------------------------------------------------------
def cfc_kernel(xh_ref, ts_ref, wbb_ref, bbb_ref, wh_ref, bh_ref, out_ref, *, hpad):
    xh = xh_ref[...]

    # backbone: Linear + LeCun tanh (1.7159 * tanh(0.666 * x))
    z = jnp.dot(xh, wbb_ref[...], preferred_element_type=jnp.float32) + bbb_ref[...]
    bb = 1.7159 * jnp.tanh(0.666 * z)                       # (tb, U)

    # all four heads in one lane-dense matmul
    heads = jnp.dot(bb, wh_ref[...], preferred_element_type=jnp.float32) + bh_ref[...]

    ff1 = jnp.tanh(heads[:, 0 * hpad:1 * hpad])
    ff2 = jnp.tanh(heads[:, 1 * hpad:2 * hpad])
    t_a = heads[:, 2 * hpad:3 * hpad]
    t_b = heads[:, 3 * hpad:4 * hpad]

    ts = ts_ref[...]                                        # (tb, 1) -> broadcast
    t_interp = jax.nn.sigmoid(t_a * ts + t_b)

    out_ref[...] = (ff1 * (1.0 - t_interp) + t_interp * ff2).astype(out_ref.dtype)


# ---------------------------------------------------------------------------
# Wrapper: packing, padding, pallas_call
# ---------------------------------------------------------------------------
def cfc_cell_forward(x, hx, ts, params):
    B, d_in = x.shape
    H = hx.shape[1]
    U = params["w_bb"].shape[1]
    D = d_in + H
    H_pad = _round_up(H, 128)

    xh = jnp.concatenate([x, hx], axis=1).astype(jnp.float32)          # (B, D)
    ts = jnp.broadcast_to(jnp.asarray(ts, jnp.float32).reshape(-1, 1), (B, 1))

    # pack the four head Linears into one lane-dense (U, 4*H_pad) weight
    def pad_w(w):  # (U, H) -> (U, H_pad)
        return jnp.pad(w, ((0, 0), (0, H_pad - H)))

    def pad_b(b):  # (H,) -> (H_pad,)
        return jnp.pad(b, (0, H_pad - H))

    w_heads = jnp.concatenate(
        [pad_w(params["w_ff1"]), pad_w(params["w_ff2"]),
         pad_w(params["w_ta"]), pad_w(params["w_tb"])], axis=1)        # (U, 4*H_pad)
    b_heads = jnp.concatenate(
        [pad_b(params["b_ff1"]), pad_b(params["b_ff2"]),
         pad_b(params["b_ta"]), pad_b(params["b_tb"])]).reshape(1, 4 * H_pad)

    w_bb = params["w_bb"]                                              # (D, U)
    b_bb = params["b_bb"].reshape(1, U)

    # batch tiling: 8-row multiple, up to 256 rows per block, parallel axis
    B8 = _round_up(B, 8)
    tb = min(256, B8)
    B_pad = _round_up(B8, tb)
    xh_p = jnp.pad(xh, ((0, B_pad - B), (0, 0)))
    ts_p = jnp.pad(ts, ((0, B_pad - B), (0, 0)))

    out = pl.pallas_call(
        functools.partial(cfc_kernel, hpad=H_pad),
        out_shape=jax.ShapeDtypeStruct((B_pad, H_pad), jnp.float32),
        grid=(B_pad // tb,),
        in_specs=[
            pl.BlockSpec((tb, D), lambda b: (b, 0)),
            pl.BlockSpec((tb, 1), lambda b: (b, 0)),
            pl.BlockSpec((D, U), lambda b: (0, 0)),
            pl.BlockSpec((1, U), lambda b: (0, 0)),
            pl.BlockSpec((U, 4 * H_pad), lambda b: (0, 0)),
            pl.BlockSpec((1, 4 * H_pad), lambda b: (0, 0)),
        ],
        out_specs=pl.BlockSpec((tb, H_pad), lambda b: (b, 0)),
        compiler_params=pltpu.CompilerParams(dimension_semantics=("parallel",)),
    )(xh_p, ts_p, w_bb, b_bb, w_heads, b_heads)

    new_h = out[:B, :H]
    return new_h, new_h


# ---------------------------------------------------------------------------
# Pure-JAX reference for correctness checking
# ---------------------------------------------------------------------------
def reference_forward(x, hx, ts, p):
    xh = jnp.concatenate([x, hx], axis=1)
    z = xh @ p["w_bb"] + p["b_bb"]
    bb = 1.7159 * jnp.tanh(0.666 * z)
    ff1 = jnp.tanh(bb @ p["w_ff1"] + p["b_ff1"])
    ff2 = jnp.tanh(bb @ p["w_ff2"] + p["b_ff2"])
    t_a = bb @ p["w_ta"] + p["b_ta"]
    t_b = bb @ p["w_tb"] + p["b_tb"]
    t_interp = jax.nn.sigmoid(t_a * ts.reshape(-1, 1) + t_b)
    new_h = ff1 * (1.0 - t_interp) + t_interp * ff2
    return new_h, new_h


# ---------------------------------------------------------------------------
# Deterministic init (xavier-uniform weights, PyTorch-Linear-style biases),
# weights stored in (in, out) layout.
# ---------------------------------------------------------------------------
def init_params(key, input_size, hidden_size, backbone_units):
    D = input_size + hidden_size

    def xavier(k, fan_in, fan_out):
        bound = (6.0 / (fan_in + fan_out)) ** 0.5
        return jax.random.uniform(k, (fan_in, fan_out), minval=-bound,
                                  maxval=bound, dtype=jnp.float32)

    def bias(k, fan_in, fan_out):
        bound = 1.0 / fan_in ** 0.5
        return jax.random.uniform(k, (fan_out,), minval=-bound,
                                  maxval=bound, dtype=jnp.float32)

    ks = jax.random.split(key, 10)
    return dict(
        w_bb=xavier(ks[0], D, backbone_units),
        b_bb=bias(ks[1], D, backbone_units),
        w_ff1=xavier(ks[2], backbone_units, hidden_size),
        b_ff1=bias(ks[3], backbone_units, hidden_size),
        w_ff2=xavier(ks[4], backbone_units, hidden_size),
        b_ff2=bias(ks[5], backbone_units, hidden_size),
        w_ta=xavier(ks[6], backbone_units, hidden_size),
        b_ta=bias(ks[7], backbone_units, hidden_size),
        w_tb=xavier(ks[8], backbone_units, hidden_size),
        b_tb=bias(ks[9], backbone_units, hidden_size),
    )


if __name__ == "__main__":
    key = jax.random.PRNGKey(0)
    kx, kh, kt, kp = jax.random.split(key, 4)

    B, INPUT, HIDDEN, UNITS = 2, 16, 32, 128
    x = jax.random.normal(kx, (B, INPUT), dtype=jnp.float32)
    hx = jax.random.normal(kh, (B, HIDDEN), dtype=jnp.float32)
    ts = jax.random.uniform(kt, (B, 1), minval=0.5, maxval=1.5, dtype=jnp.float32)
    params = init_params(kp, INPUT, HIDDEN, UNITS)

    new_h, out_h = jax.jit(cfc_cell_forward)(x, hx, ts, params)
    new_h = jax.block_until_ready(new_h)
    assert new_h.shape == (B, HIDDEN), new_h.shape

    ref_h, _ = reference_forward(x, hx, ts, params)
    max_diff = float(jnp.max(jnp.abs(new_h - ref_h)))
    assert max_diff < 1e-4, f"mismatch vs reference: max |diff| = {max_diff}"

    print("KERNEL_OK")
</pallas_src>

<mosaic_0001>
module attributes {stable_mosaic.version = 11 : i64} {
  func.func @cfc_kernel(%arg0: i32, %arg1: memref<8x48xf32, #tpu.memory_space<vmem>>, %arg2: memref<8x1xf32, #tpu.memory_space<vmem>>, %arg3: memref<48x128xf32, #tpu.memory_space<vmem>>, %arg4: memref<1x128xf32, #tpu.memory_space<vmem>>, %arg5: memref<128x512xf32, #tpu.memory_space<vmem>>, %arg6: memref<1x512xf32, #tpu.memory_space<vmem>>, %arg7: memref<8x128xf32, #tpu.memory_space<vmem>>) attributes {dimension_semantics = [#tpu.dimension_semantics<parallel>], iteration_bounds = array<i64: 1>, scalar_prefetch = 0 : i64, scratch_operands = 0 : i64, tpu.core_type = #tpu.core_type<tc>, window_params = [{transform_indices = @transform_0, window_bounds = array<i64: 8, 48>}, {transform_indices = @transform_1, window_bounds = array<i64: 8, 1>}, {pipeline_mode = #tpu.pipeline_mode<synchronous>, transform_indices = @transform_2, window_bounds = array<i64: 48, 128>}, {pipeline_mode = #tpu.pipeline_mode<synchronous>, transform_indices = @transform_3, window_bounds = array<i64: 1, 128>}, {pipeline_mode = #tpu.pipeline_mode<synchronous>, transform_indices = @transform_4, window_bounds = array<i64: 128, 512>}, {pipeline_mode = #tpu.pipeline_mode<synchronous>, transform_indices = @transform_5, window_bounds = array<i64: 1, 512>}, {transform_indices = @transform_6, window_bounds = array<i64: 8, 128>}]} {
    %c0 = arith.constant 0 : index
    %c0_0 = arith.constant 0 : index
    %0 = vector.load %arg1[%c0, %c0_0] : memref<8x48xf32, #tpu.memory_space<vmem>>, vector<8x48xf32>
    %c0_1 = arith.constant 0 : index
    %c0_2 = arith.constant 0 : index
    %1 = vector.load %arg3[%c0_1, %c0_2] : memref<48x128xf32, #tpu.memory_space<vmem>>, vector<48x128xf32>
    %cst = arith.constant dense<0.000000e+00> : vector<8x128xf32>
    %2 = tpu.matmul %0, %1, %cst {dimension_numbers = #tpu.dot_dimension_numbers<[1], [0], [0], [1], [0, 0, 1, 1], [], []>} : vector<8x48xf32>, vector<48x128xf32>, vector<8x128xf32> -> vector<8x128xf32>
    %c0_3 = arith.constant 0 : index
    %c0_4 = arith.constant 0 : index
    %3 = vector.load %arg4[%c0_3, %c0_4] : memref<1x128xf32, #tpu.memory_space<vmem>>, vector<1x128xf32>
    %4 = vector.broadcast %3 : vector<1x128xf32> to vector<8x128xf32>
    %5 = arith.addf %2, %4 : vector<8x128xf32>
    %cst_5 = arith.constant 6.660000e-01 : f32
    %6 = vector.broadcast %cst_5 : f32 to vector<8x128xf32>
    %7 = arith.mulf %6, %5 : vector<8x128xf32>
    %8 = math.tanh %7 : vector<8x128xf32>
    %cst_6 = arith.constant 1.715900e+00 : f32
    %9 = vector.broadcast %cst_6 : f32 to vector<8x128xf32>
    %10 = arith.mulf %9, %8 : vector<8x128xf32>
    %c0_7 = arith.constant 0 : index
    %c0_8 = arith.constant 0 : index
    %11 = vector.load %arg5[%c0_7, %c0_8] : memref<128x512xf32, #tpu.memory_space<vmem>>, vector<128x512xf32>
    %cst_9 = arith.constant dense<0.000000e+00> : vector<8x512xf32>
    %12 = tpu.matmul %10, %11, %cst_9 {dimension_numbers = #tpu.dot_dimension_numbers<[1], [0], [0], [1], [0, 0, 1, 1], [], []>} : vector<8x128xf32>, vector<128x512xf32>, vector<8x512xf32> -> vector<8x512xf32>
    %c0_10 = arith.constant 0 : index
    %c0_11 = arith.constant 0 : index
    %13 = vector.load %arg6[%c0_10, %c0_11] : memref<1x512xf32, #tpu.memory_space<vmem>>, vector<1x512xf32>
    %14 = vector.broadcast %13 : vector<1x512xf32> to vector<8x512xf32>
    %15 = arith.addf %12, %14 : vector<8x512xf32>
    %16 = vector.extract_strided_slice %15 {offsets = [0, 0], sizes = [8, 128], strides = [1, 1]} : vector<8x512xf32> to vector<8x128xf32>
    %17 = math.tanh %16 : vector<8x128xf32>
    %18 = vector.extract_strided_slice %15 {offsets = [0, 128], sizes = [8, 128], strides = [1, 1]} : vector<8x512xf32> to vector<8x128xf32>
    %19 = math.tanh %18 : vector<8x128xf32>
    %20 = vector.extract_strided_slice %15 {offsets = [0, 256], sizes = [8, 128], strides = [1, 1]} : vector<8x512xf32> to vector<8x128xf32>
    %21 = vector.extract_strided_slice %15 {offsets = [0, 384], sizes = [8, 128], strides = [1, 1]} : vector<8x512xf32> to vector<8x128xf32>
    %c0_12 = arith.constant 0 : index
    %c0_13 = arith.constant 0 : index
    %22 = vector.load %arg2[%c0_12, %c0_13] : memref<8x1xf32, #tpu.memory_space<vmem>>, vector<8x1xf32>
    %23 = vector.broadcast %22 : vector<8x1xf32> to vector<8x128xf32>
    %24 = arith.mulf %20, %23 : vector<8x128xf32>
    %25 = arith.addf %24, %21 : vector<8x128xf32>
    %26 = arith.negf %25 : vector<8x128xf32>
    %27 = math.exp %26 : vector<8x128xf32>
    %cst_14 = arith.constant 1.000000e+00 : f32
    %28 = vector.broadcast %cst_14 : f32 to vector<8x128xf32>
    %29 = arith.addf %28, %27 : vector<8x128xf32>
    %30 = arith.divf %28, %29 : vector<8x128xf32>
    %cst_15 = arith.constant 1.000000e+00 : f32
    %31 = vector.broadcast %cst_15 : f32 to vector<8x128xf32>
    %32 = arith.subf %31, %30 : vector<8x128xf32>
    %33 = arith.mulf %17, %32 : vector<8x128xf32>
    %34 = arith.mulf %30, %19 : vector<8x128xf32>
    %35 = arith.addf %33, %34 : vector<8x128xf32>
    %c0_16 = arith.constant 0 : index
    %c0_17 = arith.constant 0 : index
    %36 = vector.load %arg7[%c0_16, %c0_17] : memref<8x128xf32, #tpu.memory_space<vmem>>, vector<8x128xf32>
    tpu.vector_store %arg7[%c0_16, %c0_17], %35 {strides = array<i32>} : memref<8x128xf32, #tpu.memory_space<vmem>>, vector<8x128xf32>,
    return
  }
  func.func @transform_0(%arg0: i32) -> (i32, i32) {
    %c0_i32 = arith.constant 0 : i32
    %c0_i32_0 = arith.constant 0 : i32
    return %arg0, %c0_i32 : i32, i32
  }
  func.func @transform_1(%arg0: i32) -> (i32, i32) {
    %c0_i32 = arith.constant 0 : i32
    %c0_i32_0 = arith.constant 0 : i32
    return %arg0, %c0_i32 : i32, i32
  }
  func.func @transform_2(%arg0: i32) -> (i32, i32) {
    %c0_i32 = arith.constant 0 : i32
    %c0_i32_0 = arith.constant 0 : i32
    %c0_i32_1 = arith.constant 0 : i32
    return %c0_i32, %c0_i32_0 : i32, i32
  }
  func.func @transform_3(%arg0: i32) -> (i32, i32) {
    %c0_i32 = arith.constant 0 : i32
    %c0_i32_0 = arith.constant 0 : i32
    %c0_i32_1 = arith.constant 0 : i32
    return %c0_i32, %c0_i32_0 : i32, i32
  }
  func.func @transform_4(%arg0: i32) -> (i32, i32) {
    %c0_i32 = arith.constant 0 : i32
    %c0_i32_0 = arith.constant 0 : i32
    %c0_i32_1 = arith.constant 0 : i32
    return %c0_i32, %c0_i32_0 : i32, i32
  }
  func.func @transform_5(%arg0: i32) -> (i32, i32) {
    %c0_i32 = arith.constant 0 : i32
    %c0_i32_0 = arith.constant 0 : i32
    %c0_i32_1 = arith.constant 0 : i32
    return %c0_i32, %c0_i32_0 : i32, i32
  }
  func.func @transform_6(%arg0: i32) -> (i32, i32) {
    %c0_i32 = arith.constant 0 : i32
    %c0_i32_0 = arith.constant 0 : i32
    return %arg0, %c0_i32 : i32, i32
  }
}

</mosaic_0001>

<llo_original>
// kernel: cfc_cell_forward.1
$region0: #{cfc_cell_forward.1}
  #allocation0 [shape = 'u32[]', space=smem, size = 0x4, offset = 0x4, fixed_abs, tag = 'smem constant byte address 0x4 - core index']
  #allocation1 [shape = 'u32[144,128]{1,0:T(1,128)}', space=vmem, size = 0x12000, scoped, tag = 'internal scratch']
  %s0 = inlined_call_operand.vmem [shape: f32[8,48], index: 0, kind: input, shape index: {}]
  %s1 = inlined_call_operand.vmem [shape: f32[8,1], index: 1, kind: input, shape index: {}]
  %s2 = inlined_call_operand.vmem [shape: f32[48,128], index: 2, kind: input, shape index: {}]
  %s3 = inlined_call_operand.vmem [shape: f32[1,128], index: 3, kind: input, shape index: {}]
  %s4 = inlined_call_operand.vmem [shape: f32[128,512], index: 4, kind: input, shape index: {}]
  %s5 = inlined_call_operand.vmem [shape: f32[1,512], index: 5, kind: input, shape index: {}]
  %s6 = inlined_call_operand.vmem [shape: f32[8,128], index: 6, kind: output, shape index: {}]
  %s7 = sld [smem:[#allocation0]]
  $region34: #{cfc_cell_forward.1} parent=0
    _
  %s9 = ssub.s32 1, %s7
  %s10 = scalar_select 0, %s9, %s7
  // Predicated region
  $region2: #{cfc_cell_forward.1} parent=0 // pred_check
    _
  $region3: #{cfc_cell_forward.1} parent=0 // pred_check_branch
    %12 = sbr.rel (0) target = $region5
  $region4: #{cfc_cell_forward.1} parent=0 // pred_region
    _
  $region5: #{cfc_cell_forward.1} parent=0 // pred_fallthru
    _
  // Predicated region
  $region6: #{cfc_cell_forward.1} parent=0 // pred_check
    _
  $region7: #{cfc_cell_forward.1} parent=0 // pred_check_branch
    %14 = sbr.rel (0) target = $region9
  $region8: #{cfc_cell_forward.1} parent=0 // pred_region
    _
  $region9: #{cfc_cell_forward.1} parent=0 // pred_fallthru
    _
  // Predicated region
  $region10: #{cfc_cell_forward.1} parent=0 // pred_check
    _
  $region11: #{cfc_cell_forward.1} parent=0 // pred_check_branch
    %16 = sbr.rel (0) target = $region13
  $region12: #{cfc_cell_forward.1} parent=0 // pred_region
    _
  $region13: #{cfc_cell_forward.1} parent=0 // pred_fallthru
    _
  // Predicated region
  $region14: #{cfc_cell_forward.1} parent=0 // pred_check
    _
  $region15: #{cfc_cell_forward.1} parent=0 // pred_check_branch
    %18 = sbr.rel (0) target = $region17
  $region16: #{cfc_cell_forward.1} parent=0 // pred_region
    _
  $region17: #{cfc_cell_forward.1} parent=0 // pred_fallthru
    _
  // Predicated region
  $region18: #{cfc_cell_forward.1} parent=0 // pred_check
    _
  $region19: #{cfc_cell_forward.1} parent=0 // pred_check_branch
    %20 = sbr.rel (0) target = $region21
  $region20: #{cfc_cell_forward.1} parent=0 // pred_region
    _
  $region21: #{cfc_cell_forward.1} parent=0 // pred_fallthru
    _
  // Predicated region
  $region22: #{cfc_cell_forward.1} parent=0 // pred_check
    _
  $region23: #{cfc_cell_forward.1} parent=0 // pred_check_branch
    %22 = sbr.rel (0) target = $region25
  $region24: #{cfc_cell_forward.1} parent=0 // pred_region
    _
  $region25: #{cfc_cell_forward.1} parent=0 // pred_fallthru
    _
  %v23 = vld [vmem:[%s0] sm:$0xff]
  %v24 = vld [vmem:[%s2] sm:$0xff]
  %v25 = vld [vmem:[%s2 + $0x8] sm:$0xff]
  %v26 = vld [vmem:[%s2 + $0x10] sm:$0xff]
  %v27 = vld [vmem:[%s2 + $0x18] sm:$0xff]
  %v28 = vld [vmem:[%s2 + $0x20] sm:$0xff]
  %v29 = vld [vmem:[%s2 + $0x28] sm:$0xff]
  %v30 = vld [vmem:[%s3] sm:$0x1]
  %v32 = vlaneseq
  %v33 = vshrl.u32 %v32, 7
  %v34 = vsub.s32 0, %v33
  %v35 = vrot.slane %v30, %v34
  %vm37 = vcmask 392192
  %v39 = vsel %vm37, %v23, 0
  %41 = vmatprep.subr.mxu0 0.0
  %42 = vmatpush1.msra.mxu0 %v24
  %43 = vmatprep.subr.mxu0 0.0
  %44 = vmatpush1.msra.mxu0 %v25
  %45 = vmatprep.subr.mxu0 0.0
  %46 = vmatpush1.msra.mxu0 %v26
  %47 = vmatprep.subr.mxu0 0.0
  %48 = vmatpush1.msra.mxu0 %v27
  %49 = vmatprep.subr.mxu0 0.0
  %50 = vmatpush1.msra.mxu0 %v28
  %51 = vmatprep.subr.mxu0 0.0
  %52 = vmatpush1.msra.mxu0 %v29
  %53 = vmatprep.subr.mxu0 0.0
  %54 = vmatpush1.msra.mxu0 0.0
  %55 = vmatprep.subr.mxu0 0.0
  %56 = vmatpush1.msra.mxu0 0.0
  %57 = vmatprep.subr.mxu0 0.0
  %58 = vmatpush1.msra.mxu0 0.0
  %59 = vmatprep.subr.mxu0 0.0
  %60 = vmatpush1.msra.mxu0 0.0
  %61 = vmatprep.subr.mxu0 0.0
  %62 = vmatpush1.msra.mxu0 0.0
  %63 = vmatprep.subr.mxu0 0.0
  %64 = vmatpush1.msra.mxu0 0.0
  %65 = vmatprep.subr.mxu0 0.0
  %66 = vmatpush1.msra.mxu0 0.0
  %67 = vmatprep.subr.mxu0 0.0
  %68 = vmatpush1.msra.mxu0 0.0
  %69 = vmatprep.subr.mxu0 0.0
  %70 = vmatpush1.msra.mxu0 0.0
  %71 = vmatprep.subr.mxu0 0.0
  %72 = vmatpush1.msra.mxu0 0.0
  %73 = vmatprep.subr.mxu0 0.0
  %74 = vmatpush1.msra.mxu0 0.0
  %75 = vmatprep.subr.mxu0 0.0
  %76 = vmatpush1.msra.mxu0 0.0
  %77 = vmatprep.subr.mxu0 0.0
  %78 = vmatpush1.msra.mxu0 0.0
  %79 = vmatprep.subr.mxu0 0.0
  %80 = vmatpush1.msra.mxu0 0.0
  %81 = vmatprep.subr.mxu0 0.0
  %82 = vmatpush1.msra.mxu0 0.0
  %83 = vmatprep.subr.mxu0 0.0
  %84 = vmatpush1.msra.mxu0 0.0
  %85 = vmatprep.subr.mxu0 0.0
  %86 = vmatpush1.msra.mxu0 0.0
  %87 = vmatprep.subr.mxu0 0.0
  %88 = vmatpush1.msra.mxu0 0.0
  %89 = vmatprep.subr.mxu0 0.0
  %90 = vmatpush1.msra.mxu0 0.0
  %91 = vmatprep.subr.mxu0 0.0
  %92 = vmatpush1.msra.mxu0 0.0
  %93 = vmatprep.subr.mxu0 0.0
  %94 = vmatpush1.msra.mxu0 0.0
  %95 = vmatprep.subr.mxu0 0.0
  %96 = vmatpush1.msra.mxu0 0.0
  %97 = vmatprep.subr.mxu0 0.0
  %98 = vmatpush1.msra.mxu0 0.0
  %99 = vmatprep.subr.mxu0 0.0
  %100 = vmatpush1.msra.mxu0 0.0
  %101 = vmatprep.subr.mxu0 0.0
  %102 = vmatpush1.msra.mxu0 0.0
  %103 = vmatprep.subr.mxu0 0.0
  %104 = vmatpush1.msra.mxu0 0.0
  %105 = vmatprep.mubr.f32.mxu0 0.0
  %106 = vmatmul.mubr.f32.gmra.mrb[0].mxu0 %v39
  %v107 = vpop.f32.mrb[0].mxu0
  %v108 = vadd.f32 %v35, %v107
  %v109 = vpop.f32.mrb[0].mxu0
  %110 = vdwg.mxu0
  %v111 = vmul.f32 %v108, 0.666
  %v112 = vtanh.pop %v111
  %v113 = vmul.f32 %v112, 1.7159
  %v114 = vld [vmem:[%s4] sm:$0xff]
  %v115 = vld [vmem:[%s4 + $0x8] sm:$0xff]
  %v116 = vld [vmem:[%s4 + $0x10] sm:$0xff]
  %v117 = vld [vmem:[%s4 + $0x18] sm:$0xff]
  %v118 = vld [vmem:[%s4 + $0x20] sm:$0xff]
  %v119 = vld [vmem:[%s4 + $0x28] sm:$0xff]
  %v120 = vld [vmem:[%s4 + $0x30] sm:$0xff]
  %v121 = vld [vmem:[%s4 + $0x38] sm:$0xff]
  %v122 = vld [vmem:[%s4 + $0x40] sm:$0xff]
  %v123 = vld [vmem:[%s4 + $0x48] sm:$0xff]
  %v124 = vld [vmem:[%s4 + $0x50] sm:$0xff]
  %v125 = vld [vmem:[%s4 + $0x58] sm:$0xff]
  %v126 = vld [vmem:[%s4 + $0x60] sm:$0xff]
  %v127 = vld [vmem:[%s4 + $0x68] sm:$0xff]
  %v128 = vld [vmem:[%s4 + $0x70] sm:$0xff]
  %v129 = vld [vmem:[%s4 + $0x78] sm:$0xff]
  %v130 = vld [vmem:[%s4 + $0x80] sm:$0xff]
  %v131 = vld [vmem:[%s4 + $0x88] sm:$0xff]
  %v132 = vld [vmem:[%s4 + $0x90] sm:$0xff]
  %v133 = vld [vmem:[%s4 + $0x98] sm:$0xff]
  %v134 = vld [vmem:[%s4 + $0xa0] sm:$0xff]
  %v135 = vld [vmem:[%s4 + $0xa8] sm:$0xff]
  %v136 = vld [vmem:[%s4 + $0xb0] sm:$0xff]
  %v137 = vld [vmem:[%s4 + $0xb8] sm:$0xff]
  %v138 = vld [vmem:[%s4 + $0xc0] sm:$0xff]
  %v139 = vld [vmem:[%s4 + $0xc8] sm:$0xff]
  %v140 = vld [vmem:[%s4 + $0xd0] sm:$0xff]
  %v141 = vld [vmem:[%s4 + $0xd8] sm:$0xff]
  %v142 = vld [vmem:[%s4 + $0xe0] sm:$0xff]
  %v143 = vld [vmem:[%s4 + $0xe8] sm:$0xff]
  %v144 = vld [vmem:[%s4 + $0xf0] sm:$0xff]
  %v145 = vld [vmem:[%s4 + $0xf8] sm:$0xff]
  %v146 = vld [vmem:[%s4 + $0x100] sm:$0xff]
  %v147 = vld [vmem:[%s4 + $0x108] sm:$0xff]
  %v148 = vld [vmem:[%s4 + $0x110] sm:$0xff]
  %v149 = vld [vmem:[%s4 + $0x118] sm:$0xff]
  %v150 = vld [vmem:[%s4 + $0x120] sm:$0xff]
  %v151 = vld [vmem:[%s4 + $0x128] sm:$0xff]
  %v152 = vld [vmem:[%s4 + $0x130] sm:$0xff]
  %v153 = vld [vmem:[%s4 + $0x138] sm:$0xff]
  %v154 = vld [vmem:[%s4 + $0x140] sm:$0xff]
  %v155 = vld [vmem:[%s4 + $0x148] sm:$0xff]
  %v156 = vld [vmem:[%s4 + $0x150] sm:$0xff]
  %v157 = vld [vmem:[%s4 + $0x158] sm:$0xff]
  %v158 = vld [vmem:[%s4 + $0x160] sm:$0xff]
  %v159 = vld [vmem:[%s4 + $0x168] sm:$0xff]
  %v160 = vld [vmem:[%s4 + $0x170] sm:$0xff]
  %v161 = vld [vmem:[%s4 + $0x178] sm:$0xff]
  %v162 = vld [vmem:[%s4 + $0x180] sm:$0xff]
  %v163 = vld [vmem:[%s4 + $0x188] sm:$0xff]
  %v164 = vld [vmem:[%s4 + $0x190] sm:$0xff]
  %v165 = vld [vmem:[%s4 + $0x198] sm:$0xff]
  %v166 = vld [vmem:[%s4 + $0x1a0] sm:$0xff]
  %v167 = vld [vmem:[%s4 + $0x1a8] sm:$0xff]
  %v168 = vld [vmem:[%s4 + $0x1b0] sm:$0xff]
  %v169 = vld [vmem:[%s4 + $0x1b8] sm:$0xff]
  %v170 = vld [vmem:[%s4 + $0x1c0] sm:$0xff]
  %v171 = vld [vmem:[%s4 + $0x1c8] sm:$0xff]
  %v172 = vld [vmem:[%s4 + $0x1d0] sm:$0xff]
  %v173 = vld [vmem:[%s4 + $0x1d8] sm:$0xff]
  %v174 = vld [vmem:[%s4 + $0x1e0] sm:$0xff]
  %v175 = vld [vmem:[%s4 + $0x1e8] sm:$0xff]
  %v176 = vld [vmem:[%s4 + $0x1f0] sm:$0xff]
  %v177 = vld [vmem:[%s4 + $0x1f8] sm:$0xff]
  %v178 = vld [vmem:[%s5] sm:$0xf]
  %v180 = vlaneseq
  %v181 = vshrl.u32 %v180, 7
  %v182 = vsub.s32 0, %v181
  %v183 = vrot.slane %v178, %v182
  %v184 = vlaneseq
  %v185 = vshrl.u32 %v184, 7
  %v186 = vsub.s32 1, %v185
  %v187 = vrot.slane %v178, %v186
  %v188 = vlaneseq
  %v189 = vshrl.u32 %v188, 7
  %v190 = vsub.s32 2, %v189
  %v191 = vrot.slane %v178, %v190
  %v192 = vlaneseq
  %v193 = vshrl.u32 %v192, 7
  %v194 = vsub.s32 3, %v193
  %v195 = vrot.slane %v178, %v194
  %200 = vmatprep.subr.mxu0 %v115
  %201 = vmatpush1.msra.mxu0 %v114
  %202 = vmatprep.subr.mxu0 %v119
  %203 = vmatpush1.msra.mxu0 %v118
  %204 = vmatprep.subr.mxu0 %v123
  %205 = vmatpush1.msra.mxu0 %v122
  %206 = vmatprep.subr.mxu0 %v127
  %207 = vmatpush1.msra.mxu0 %v126
  %208 = vmatprep.subr.mxu0 %v131
  %209 = vmatpush1.msra.mxu0 %v130
  %210 = vmatprep.subr.mxu0 %v135
  %211 = vmatpush1.msra.mxu0 %v134
  %212 = vmatprep.subr.mxu0 %v139
  %213 = vmatpush1.msra.mxu0 %v138
  %214 = vmatprep.subr.mxu0 %v143
  %215 = vmatpush1.msra.mxu0 %v142
  %216 = vmatprep.subr.mxu0 %v147
  %217 = vmatpush1.msra.mxu0 %v146
  %218 = vmatprep.subr.mxu0 %v151
  %219 = vmatpush1.msra.mxu0 %v150
  %220 = vmatprep.subr.mxu0 %v155
  %221 = vmatpush1.msra.mxu0 %v154
  %222 = vmatprep.subr.mxu0 %v159
  %223 = vmatpush1.msra.mxu0 %v158
  %224 = vmatprep.subr.mxu0 %v163
  %225 = vmatpush1.msra.mxu0 %v162
  %226 = vmatprep.subr.mxu0 %v167
  %227 = vmatpush1.msra.mxu0 %v166
  %228 = vmatprep.subr.mxu0 %v171
  %229 = vmatpush1.msra.mxu0 %v170
  %230 = vmatprep.subr.mxu0 %v175
  %231 = vmatpush1.msra.mxu0 %v174
  %232 = vmatprep.subr.mxu0 0.0
  %233 = vmatpush1.msra.mxu0 0.0
  %234 = vmatprep.subr.mxu0 0.0
  %235 = vmatpush1.msra.mxu0 0.0
  %236 = vmatprep.subr.mxu0 0.0
  %237 = vmatpush1.msra.mxu0 0.0
  %238 = vmatprep.subr.mxu0 0.0
  %239 = vmatpush1.msra.mxu0 0.0
  %240 = vmatprep.subr.mxu0 0.0
  %241 = vmatpush1.msra.mxu0 0.0
  %242 = vmatprep.subr.mxu0 0.0
  %243 = vmatpush1.msra.mxu0 0.0
  %244 = vmatprep.subr.mxu0 0.0
  %245 = vmatpush1.msra.mxu0 0.0
  %246 = vmatprep.subr.mxu0 0.0
  %247 = vmatpush1.msra.mxu0 0.0
  %248 = vmatprep.subr.mxu0 0.0
  %249 = vmatpush1.msra.mxu0 0.0
  %250 = vmatprep.subr.mxu0 0.0
  %251 = vmatpush1.msra.mxu0 0.0
  %252 = vmatprep.subr.mxu0 0.0
  %253 = vmatpush1.msra.mxu0 0.0
  %254 = vmatprep.subr.mxu0 0.0
  %255 = vmatpush1.msra.mxu0 0.0
  %256 = vmatprep.subr.mxu0 0.0
  %257 = vmatpush1.msra.mxu0 0.0
  %258 = vmatprep.subr.mxu0 0.0
  %259 = vmatpush1.msra.mxu0 0.0
  %260 = vmatprep.subr.mxu0 0.0
  %261 = vmatpush1.msra.mxu0 0.0
  %262 = vmatprep.subr.mxu0 0.0
  %263 = vmatpush1.msra.mxu0 0.0
  %264 = vmatprep.mubr.f32.mxu0 0.0
  %265 = vmatmul.mubr.f32.gmra.mrb[0].mxu0 %v113
  %v266 = vpop.f32.mrb[0].mxu0
  %v267 = vadd.f32 %v183, %v266
  %v268 = vpop.f32.mrb[0].mxu0
  %v269 = vadd.f32 %v187, %v268
  %270 = vdwg.mxu0
  %271 = vmatprep.subr.mxu0 %v117
  %272 = vmatpush1.msra.mxu0 %v116
  %273 = vmatprep.subr.mxu0 %v121
  %274 = vmatpush1.msra.mxu0 %v120
  %275 = vmatprep.subr.mxu0 %v125
  %276 = vmatpush1.msra.mxu0 %v124
  %277 = vmatprep.subr.mxu0 %v129
  %278 = vmatpush1.msra.mxu0 %v128
  %279 = vmatprep.subr.mxu0 %v133
  %280 = vmatpush1.msra.mxu0 %v132
  %281 = vmatprep.subr.mxu0 %v137
  %282 = vmatpush1.msra.mxu0 %v136
  %283 = vmatprep.subr.mxu0 %v141
  %284 = vmatpush1.msra.mxu0 %v140
  %285 = vmatprep.subr.mxu0 %v145
  %286 = vmatpush1.msra.mxu0 %v144
  %287 = vmatprep.subr.mxu0 %v149
  %288 = vmatpush1.msra.mxu0 %v148
  %289 = vmatprep.subr.mxu0 %v153
  %290 = vmatpush1.msra.mxu0 %v152
  %291 = vmatprep.subr.mxu0 %v157
  %292 = vmatpush1.msra.mxu0 %v156
  %293 = vmatprep.subr.mxu0 %v161
  %294 = vmatpush1.msra.mxu0 %v160
  %295 = vmatprep.subr.mxu0 %v165
  %296 = vmatpush1.msra.mxu0 %v164
  %297 = vmatprep.subr.mxu0 %v169
  %298 = vmatpush1.msra.mxu0 %v168
  %299 = vmatprep.subr.mxu0 %v173
  %300 = vmatpush1.msra.mxu0 %v172
  %301 = vmatprep.subr.mxu0 %v177
  %302 = vmatpush1.msra.mxu0 %v176
  %303 = vmatprep.subr.mxu0 0.0
  %304 = vmatpush1.msra.mxu0 0.0
  %305 = vmatprep.subr.mxu0 0.0
  %306 = vmatpush1.msra.mxu0 0.0
  %307 = vmatprep.subr.mxu0 0.0
  %308 = vmatpush1.msra.mxu0 0.0
  %309 = vmatprep.subr.mxu0 0.0
  %310 = vmatpush1.msra.mxu0 0.0
  %311 = vmatprep.subr.mxu0 0.0
  %312 = vmatpush1.msra.mxu0 0.0
  %313 = vmatprep.subr.mxu0 0.0
  %314 = vmatpush1.msra.mxu0 0.0
  %315 = vmatprep.subr.mxu0 0.0
  %316 = vmatpush1.msra.mxu0 0.0
  %317 = vmatprep.subr.mxu0 0.0
  %318 = vmatpush1.msra.mxu0 0.0
  %319 = vmatprep.subr.mxu0 0.0
  %320 = vmatpush1.msra.mxu0 0.0
  %321 = vmatprep.subr.mxu0 0.0
  %322 = vmatpush1.msra.mxu0 0.0
  %323 = vmatprep.subr.mxu0 0.0
  %324 = vmatpush1.msra.mxu0 0.0
  %325 = vmatprep.subr.mxu0 0.0
  %326 = vmatpush1.msra.mxu0 0.0
  %327 = vmatprep.subr.mxu0 0.0
  %328 = vmatpush1.msra.mxu0 0.0
  %329 = vmatprep.subr.mxu0 0.0
  %330 = vmatpush1.msra.mxu0 0.0
  %331 = vmatprep.subr.mxu0 0.0
  %332 = vmatpush1.msra.mxu0 0.0
  %333 = vmatprep.subr.mxu0 0.0
  %334 = vmatpush1.msra.mxu0 0.0
  %335 = vmatprep.mubr.f32.mxu0 0.0
  %336 = vmatmul.mubr.f32.gmra.mrb[0].mxu0 %v113
  %v337 = vpop.f32.mrb[0].mxu0
  %v338 = vadd.f32 %v191, %v337
  %v339 = vpop.f32.mrb[0].mxu0
  %v340 = vadd.f32 %v195, %v339
  %341 = vdwg.mxu0
  %v342 = vtanh.pop %v267
  %v343 = vtanh.pop %v269
  %v344 = vld [vmem:[%s1] sm:$0xff]
  %346 = vset.pattern.permute.xlu0 0
  %347 = vperm.xlu0 %346, %v344
  %v348 = vpop.permute.xlu0 %347
  %v350 = vmul.f32 %v338, %v348
  %v351 = vadd.f32 %v350, %v340
  %v352 = vxor.u32 %v351, 2147483648
  %v353 = vmul.f32 %v352, 1.442695
  %v354 = vpow.pop %v353
  %v355 = vadd.f32 %v354, 1.0
  %v356 = vrcp.pop %v355
  %v357 = vmul.f32 1.0, %v356
  %v358 = vsub.f32 1.0, %v357
  %v359 = vmul.f32 %v342, %v358
  %v360 = vmul.f32 %v357, %v343
  %v361 = vadd.f32 %v359, %v360
  %362 = vst [vmem:[%s6] sm:$0xff] %v361
  // Predicated region
  $region26: #{cfc_cell_forward.1} parent=0 // pred_check
    _
  $region27: #{cfc_cell_forward.1} parent=0 // pred_check_branch
    %364 = sbr.rel (0) target = $region29
  $region28: #{cfc_cell_forward.1} parent=0 // pred_region
    _
  $region29: #{cfc_cell_forward.1} parent=0 // pred_fallthru
    _
  // Predicated region
  $region30: #{cfc_cell_forward.1} parent=0 // pred_check
    _
  $region31: #{cfc_cell_forward.1} parent=0 // pred_check_branch
    %366 = sbr.rel (0) target = $region33
  $region32: #{cfc_cell_forward.1} parent=0 // pred_region
    _
  $region33: #{cfc_cell_forward.1} parent=0 // pred_fallthru
    _

</llo_original>
